<compile_context>
chip_gen: v5e
topology: v5e:2x2
jax: 0.10.0
libtpu: 0.0.40
codegen_flags: <defaults>
</compile_context>

<pallas_src>
import jax
import jax.numpy as jnp
from jax.experimental import pallas as pl
from jax.experimental.pallas import tpu as pltpu

EPS = 1e-5        # PyTorch BatchNorm1d default eps
OUT_ROWS = 8      # output rows (7 real head outputs + 1 zero row for sublane alignment)


# ----------------------------------------------------------------------------- kernel
def _mhd_kernel(
    xt_ref,                       # [F, tile_b]        feature-major input tile
    w1_ref, b1_ref,               # [128, F],  [128, 1]
    w2_ref, b2_ref,               # [64, 128], [64, 1]   (BN1 folded in)
    w3_ref, b3_ref,               # [32, 64],  [32, 1]   (BN2 folded in)
    wa_ref, ba_ref,               # [64, 32],  [64, 1]   fused head layer 1 (BN3 folded in)
    wb_ref, bb_ref,               # [8, 64],   [8, 1]    fused block-diag head layer 2 (row-padded)
    out_ref,                      # [8, tile_b]          lane-dense output tile
):
    x = xt_ref[...]

    # Feature extractor: Linear -> ReLU (Dropout = identity in eval; BN folded into next W/b).
    z = jnp.maximum(jnp.dot(w1_ref[...], x, preferred_element_type=jnp.float32) + b1_ref[...], 0.0)
    z = jnp.maximum(jnp.dot(w2_ref[...], z, preferred_element_type=jnp.float32) + b2_ref[...], 0.0)
    z = jnp.maximum(jnp.dot(w3_ref[...], z, preferred_element_type=jnp.float32) + b3_ref[...], 0.0)

    # Fused heads: Linear(32 -> 4*16) -> ReLU -> block-diagonal Linear(4*16 -> 7, padded to 8 rows).
    h = jnp.maximum(jnp.dot(wa_ref[...], z, preferred_element_type=jnp.float32) + ba_ref[...], 0.0)
    out = jnp.dot(wb_ref[...], h, preferred_element_type=jnp.float32) + bb_ref[...]

    out_ref[...] = out.astype(out_ref.dtype)


# ----------------------------------------------------------------------------- wrapper
def _cdiv(a, b):
    return -(-a // b)


def _round_up(n, m):
    return ((n + m - 1) // m) * m


def mhd_waveletnet_forward(x, kp, *, tile_b=None):
    """x: [B, wavelet_features] float32. kp: output of prepare_kernel_params()."""
    B, F = x.shape

    if tile_b is None:
        # Derive the tile from B (avoids pathological padding at unlucky batch
        # sizes), target ~2048 rows/tile to amortize the ~0.35 us per-step
        # overhead, and keep the tile count >= 2 and even for large batches so
        # v7x's two TensorCores split the "parallel" grid axis evenly.
        num_tiles = max(1, _cdiv(B, 2048))
        if num_tiles == 1 and B >= 512:
            num_tiles = 2
        if num_tiles > 1 and (num_tiles % 2):
            num_tiles += 1
        tile_b = _round_up(_cdiv(B, num_tiles), 128)
    else:
        tile_b = _round_up(tile_b, 128)

    num_tiles = _cdiv(B, tile_b)
    Bp = num_tiles * tile_b

    # Feed x feature-major (batch on lanes).  Padded batch columns produce
    # garbage rows that are sliced off below.
    xt = jnp.transpose(x)                                   # [F, B]
    if Bp != B:
        xt = jnp.pad(xt, ((0, 0), (0, Bp - B)))

    weights = (
        kp["w1t"], kp["b1t"],
        kp["w2t"], kp["b2t"],
        kp["w3t"], kp["b3t"],
        kp["wat"], kp["bat"],
        kp["wbt"], kp["bbt"],
    )

    def const_spec(a):
        # Full-extent block with a constant index_map: DMA'd once, then kept
        # VMEM-resident across all grid steps.
        return pl.BlockSpec(a.shape, lambda i: (0, 0))

    out_t = pl.pallas_call(
        _mhd_kernel,
        out_shape=jax.ShapeDtypeStruct((OUT_ROWS, Bp), jnp.float32),
        grid=(num_tiles,),
        in_specs=[pl.BlockSpec((F, tile_b), lambda i: (0, i))]
                 + [const_spec(a) for a in weights],
        out_specs=pl.BlockSpec((OUT_ROWS, tile_b), lambda i: (0, i)),
        compiler_params=pltpu.CompilerParams(
            dimension_semantics=("parallel",),
            vmem_limit_bytes=32 * 1024 * 1024,
        ),
    )(xt, *weights)

    out = jnp.transpose(out_t[:7, :B])                      # [B, 7]
    return {
        "singularities": out[:, 0:1],
        "intensity": out[:, 1:2],
        "energy": out[:, 2:3],
        "regime": out[:, 3:7],
    }


# ----------------------------------------------------------------------------- params
def init_raw_params(key, wavelet_features=100, hidden_dims=(128, 64, 32)):
    """Deterministic synthetic parameters matching the PyTorch module's shapes."""
    n_keys = 6 * 3 + 4 * 4
    keys = jax.random.split(key, n_keys + 8)
    ki = iter(range(len(keys)))

    def lin(kw, kb, din, dout, scale=0.1):
        w = scale * jax.random.normal(kw, (din, dout), jnp.float32)
        b = scale * jax.random.normal(kb, (1, dout), jnp.float32)
        return w, b

    p = {}
    dims = [wavelet_features] + list(hidden_dims)
    for i in range(3):
        din, dout = dims[i], dims[i + 1]
        w, b = lin(keys[next(ki)], keys[next(ki)], din, dout)
        p[f"w{i+1}"], p[f"b{i+1}"] = w, b
        # BatchNorm1d affine params / running stats (eval mode)
        p[f"g{i+1}"] = 1.0 + 0.05 * jax.random.normal(keys[next(ki)], (1, dout), jnp.float32)
        p[f"be{i+1}"] = 0.05 * jax.random.normal(keys[next(ki)], (1, dout), jnp.float32)
        p[f"m{i+1}"] = 0.05 * jax.random.normal(keys[next(ki)], (1, dout), jnp.float32)
        p[f"v{i+1}"] = 1.0 + 0.1 * jax.random.uniform(keys[next(ki)], (1, dout), jnp.float32)

    # Heads: Linear(32,16) -> ReLU -> Linear(16, out_dim)
    head_out_dims = [1, 1, 1, 4]  # singularity, intensity, energy, regime
    p["heads"] = []
    for od in head_out_dims:
        wA, bA = lin(keys[next(ki)], keys[next(ki)], hidden_dims[-1], 16)
        wB, bB = lin(keys[next(ki)], keys[next(ki)], 16, od)
        p["heads"].append((wA, bA, wB, bB))
    return p


def prepare_kernel_params(raw):
    """Transpose weights to feature-major, fold each BatchNorm into the NEXT
    layer's weight/bias, fuse the 4 heads, pad the final layer to 8 rows."""
    # BN(z) = z * s + c with s = g * rsqrt(v + eps), c = be - m * s.
    s, c = {}, {}
    for i in range(1, 4):
        s[i] = raw[f"g{i}"] * jax.lax.rsqrt(raw[f"v{i}"] + EPS)   # [1, dout_i]
        c[i] = raw[f"be{i}"] - raw[f"m{i}"] * s[i]

    kp = {}
    # Layer 1 (no preceding BN).
    kp["w1t"] = raw["w1"].T                                       # [128, F]
    kp["b1t"] = raw["b1"].T                                       # [128, 1]
    # Layer 2 absorbs BN1:  W2' = diag(s1) W2,  b2' = c1 @ W2 + b2.
    kp["w2t"] = (raw["w2"] * s[1].T).T                            # [64, 128]
    kp["b2t"] = (c[1] @ raw["w2"] + raw["b2"]).T                  # [64, 1]
    # Layer 3 absorbs BN2.
    kp["w3t"] = (raw["w3"] * s[2].T).T                            # [32, 64]
    kp["b3t"] = (c[2] @ raw["w3"] + raw["b3"]).T                  # [32, 1]

    # Fused head layer 1 (concat over heads) absorbs BN3.
    wa = jnp.concatenate([wA for (wA, _, _, _) in raw["heads"]], axis=1)   # [32, 64]
    ba = jnp.concatenate([bA for (_, bA, _, _) in raw["heads"]], axis=1)   # [1, 64]
    kp["wat"] = (wa * s[3].T).T                                   # [64, 32]
    kp["bat"] = (c[3] @ wa + ba).T                                # [64, 1]

    # Fused head layer 2: block-diagonal, transposed, padded to OUT_ROWS rows.
    wbt = jnp.zeros((OUT_ROWS, 16 * len(raw["heads"])), jnp.float32)
    bbt = jnp.zeros((OUT_ROWS, 1), jnp.float32)
    col = 0
    for h, (_, _, wB, bB) in enumerate(raw["heads"]):
        od = wB.shape[1]
        wbt = wbt.at[col:col + od, h * 16:(h + 1) * 16].set(wB.T)
        bbt = bbt.at[col:col + od, 0:1].set(bB.T)
        col += od
    kp["wbt"], kp["bbt"] = wbt, bbt                               # [8, 64], [8, 1]
    return kp


# ----------------------------------------------------------------------------- reference
def reference_forward(x, raw):
    """Pure-JAX reference using the unfolded BatchNorm formula (eval mode)."""
    h = x
    for i in range(1, 4):
        z = h @ raw[f"w{i}"] + raw[f"b{i}"]
        z = jnp.maximum(z, 0.0)
        z = (z - raw[f"m{i}"]) / jnp.sqrt(raw[f"v{i}"] + EPS)
        h = z * raw[f"g{i}"] + raw[f"be{i}"]
    outs = []
    for (wA, bA, wB, bB) in raw["heads"]:
        hh = jnp.maximum(h @ wA + bA, 0.0)
        outs.append(hh @ wB + bB)
    out = jnp.concatenate(outs, axis=1)
    return {
        "singularities": out[:, 0:1],
        "intensity": out[:, 1:2],
        "energy": out[:, 2:3],
        "regime": out[:, 3:7],
    }


# ----------------------------------------------------------------------------- main
if __name__ == "__main__":
    key = jax.random.PRNGKey(0)
    k_x, k_p = jax.random.split(key)

    B, F = 8, 100  # wavelet_features=100 (module default)
    x = jax.random.normal(k_x, (B, F), jnp.float32)

    raw = init_raw_params(k_p, wavelet_features=F, hidden_dims=(128, 64, 32))
    kparams = prepare_kernel_params(raw)

    out = mhd_waveletnet_forward(x, kparams)
    jax.block_until_ready(out)

    ref = reference_forward(x, raw)
    for name in ("singularities", "intensity", "energy", "regime"):
        assert out[name].shape == ref[name].shape, name
        assert jnp.allclose(out[name], ref[name], atol=1e-4, rtol=1e-3), name

    # TODO(synk): train-mode Dropout / BatchNorm batch-statistics are not implemented
    # (kernel reproduces the module's eval-mode forward).
    print("KERNEL_OK")
</pallas_src>

<mosaic_0001>
module attributes {stable_mosaic.version = 11 : i64} {
  func.func @_mhd_kernel(%arg0: i32, %arg1: memref<100x128xf32, #tpu.memory_space<vmem>>, %arg2: memref<128x100xf32, #tpu.memory_space<vmem>>, %arg3: memref<128x1xf32, #tpu.memory_space<vmem>>, %arg4: memref<64x128xf32, #tpu.memory_space<vmem>>, %arg5: memref<64x1xf32, #tpu.memory_space<vmem>>, %arg6: memref<32x64xf32, #tpu.memory_space<vmem>>, %arg7: memref<32x1xf32, #tpu.memory_space<vmem>>, %arg8: memref<64x32xf32, #tpu.memory_space<vmem>>, %arg9: memref<64x1xf32, #tpu.memory_space<vmem>>, %arg10: memref<8x64xf32, #tpu.memory_space<vmem>>, %arg11: memref<8x1xf32, #tpu.memory_space<vmem>>, %arg12: memref<8x128xf32, #tpu.memory_space<vmem>>) attributes {dimension_semantics = [#tpu.dimension_semantics<parallel>], iteration_bounds = array<i64: 1>, scalar_prefetch = 0 : i64, scratch_operands = 0 : i64, tpu.core_type = #tpu.core_type<tc>, window_params = [{transform_indices = @transform_0, window_bounds = array<i64: 100, 128>}, {pipeline_mode = #tpu.pipeline_mode<synchronous>, transform_indices = @transform_1, window_bounds = array<i64: 128, 100>}, {pipeline_mode = #tpu.pipeline_mode<synchronous>, transform_indices = @transform_2, window_bounds = array<i64: 128, 1>}, {pipeline_mode = #tpu.pipeline_mode<synchronous>, transform_indices = @transform_3, window_bounds = array<i64: 64, 128>}, {pipeline_mode = #tpu.pipeline_mode<synchronous>, transform_indices = @transform_4, window_bounds = array<i64: 64, 1>}, {pipeline_mode = #tpu.pipeline_mode<synchronous>, transform_indices = @transform_5, window_bounds = array<i64: 32, 64>}, {pipeline_mode = #tpu.pipeline_mode<synchronous>, transform_indices = @transform_6, window_bounds = array<i64: 32, 1>}, {pipeline_mode = #tpu.pipeline_mode<synchronous>, transform_indices = @transform_7, window_bounds = array<i64: 64, 32>}, {pipeline_mode = #tpu.pipeline_mode<synchronous>, transform_indices = @transform_8, window_bounds = array<i64: 64, 1>}, {pipeline_mode = #tpu.pipeline_mode<synchronous>, transform_indices = @transform_9, window_bounds = array<i64: 8, 64>}, {pipeline_mode = #tpu.pipeline_mode<synchronous>, transform_indices = @transform_10, window_bounds = array<i64: 8, 1>}, {transform_indices = @transform_11, window_bounds = array<i64: 8, 128>}]} {
    %c0 = arith.constant 0 : index
    %c0_0 = arith.constant 0 : index
    %0 = vector.load %arg1[%c0, %c0_0] : memref<100x128xf32, #tpu.memory_space<vmem>>, vector<100x128xf32>
    %c0_1 = arith.constant 0 : index
    %c0_2 = arith.constant 0 : index
    %1 = vector.load %arg2[%c0_1, %c0_2] : memref<128x100xf32, #tpu.memory_space<vmem>>, vector<128x100xf32>
    %cst = arith.constant dense<0.000000e+00> : vector<128x128xf32>
    %2 = tpu.matmul %1, %0, %cst {dimension_numbers = #tpu.dot_dimension_numbers<[1], [0], [0], [1], [0, 0, 1, 1], [], []>} : vector<128x100xf32>, vector<100x128xf32>, vector<128x128xf32> -> vector<128x128xf32>
    %c0_3 = arith.constant 0 : index
    %c0_4 = arith.constant 0 : index
    %3 = vector.load %arg3[%c0_3, %c0_4] : memref<128x1xf32, #tpu.memory_space<vmem>>, vector<128x1xf32>
    %4 = vector.broadcast %3 : vector<128x1xf32> to vector<128x128xf32>
    %5 = arith.addf %2, %4 : vector<128x128xf32>
    %cst_5 = arith.constant 0.000000e+00 : f32
    %6 = vector.broadcast %cst_5 : f32 to vector<128x128xf32>
    %7 = arith.maximumf %5, %6 : vector<128x128xf32>
    %c0_6 = arith.constant 0 : index
    %c0_7 = arith.constant 0 : index
    %8 = vector.load %arg4[%c0_6, %c0_7] : memref<64x128xf32, #tpu.memory_space<vmem>>, vector<64x128xf32>
    %cst_8 = arith.constant dense<0.000000e+00> : vector<64x128xf32>
    %9 = tpu.matmul %8, %7, %cst_8 {dimension_numbers = #tpu.dot_dimension_numbers<[1], [0], [0], [1], [0, 0, 1, 1], [], []>} : vector<64x128xf32>, vector<128x128xf32>, vector<64x128xf32> -> vector<64x128xf32>
    %c0_9 = arith.constant 0 : index
    %c0_10 = arith.constant 0 : index
    %10 = vector.load %arg5[%c0_9, %c0_10] : memref<64x1xf32, #tpu.memory_space<vmem>>, vector<64x1xf32>
    %11 = vector.broadcast %10 : vector<64x1xf32> to vector<64x128xf32>
    %12 = arith.addf %9, %11 : vector<64x128xf32>
    %cst_11 = arith.constant 0.000000e+00 : f32
    %13 = vector.broadcast %cst_11 : f32 to vector<64x128xf32>
    %14 = arith.maximumf %12, %13 : vector<64x128xf32>
    %c0_12 = arith.constant 0 : index
    %c0_13 = arith.constant 0 : index
    %15 = vector.load %arg6[%c0_12, %c0_13] : memref<32x64xf32, #tpu.memory_space<vmem>>, vector<32x64xf32>
    %cst_14 = arith.constant dense<0.000000e+00> : vector<32x128xf32>
    %16 = tpu.matmul %15, %14, %cst_14 {dimension_numbers = #tpu.dot_dimension_numbers<[1], [0], [0], [1], [0, 0, 1, 1], [], []>} : vector<32x64xf32>, vector<64x128xf32>, vector<32x128xf32> -> vector<32x128xf32>
    %c0_15 = arith.constant 0 : index
    %c0_16 = arith.constant 0 : index
    %17 = vector.load %arg7[%c0_15, %c0_16] : memref<32x1xf32, #tpu.memory_space<vmem>>, vector<32x1xf32>
    %18 = vector.broadcast %17 : vector<32x1xf32> to vector<32x128xf32>
    %19 = arith.addf %16, %18 : vector<32x128xf32>
    %cst_17 = arith.constant 0.000000e+00 : f32
    %20 = vector.broadcast %cst_17 : f32 to vector<32x128xf32>
    %21 = arith.maximumf %19, %20 : vector<32x128xf32>
    %c0_18 = arith.constant 0 : index
    %c0_19 = arith.constant 0 : index
    %22 = vector.load %arg8[%c0_18, %c0_19] : memref<64x32xf32, #tpu.memory_space<vmem>>, vector<64x32xf32>
    %cst_20 = arith.constant dense<0.000000e+00> : vector<64x128xf32>
    %23 = tpu.matmul %22, %21, %cst_20 {dimension_numbers = #tpu.dot_dimension_numbers<[1], [0], [0], [1], [0, 0, 1, 1], [], []>} : vector<64x32xf32>, vector<32x128xf32>, vector<64x128xf32> -> vector<64x128xf32>
    %c0_21 = arith.constant 0 : index
    %c0_22 = arith.constant 0 : index
    %24 = vector.load %arg9[%c0_21, %c0_22] : memref<64x1xf32, #tpu.memory_space<vmem>>, vector<64x1xf32>
    %25 = vector.broadcast %24 : vector<64x1xf32> to vector<64x128xf32>
    %26 = arith.addf %23, %25 : vector<64x128xf32>
    %cst_23 = arith.constant 0.000000e+00 : f32
    %27 = vector.broadcast %cst_23 : f32 to vector<64x128xf32>
    %28 = arith.maximumf %26, %27 : vector<64x128xf32>
    %c0_24 = arith.constant 0 : index
    %c0_25 = arith.constant 0 : index
    %29 = vector.load %arg10[%c0_24, %c0_25] : memref<8x64xf32, #tpu.memory_space<vmem>>, vector<8x64xf32>
    %cst_26 = arith.constant dense<0.000000e+00> : vector<8x128xf32>
    %30 = tpu.matmul %29, %28, %cst_26 {dimension_numbers = #tpu.dot_dimension_numbers<[1], [0], [0], [1], [0, 0, 1, 1], [], []>} : vector<8x64xf32>, vector<64x128xf32>, vector<8x128xf32> -> vector<8x128xf32>
    %c0_27 = arith.constant 0 : index
    %c0_28 = arith.constant 0 : index
    %31 = vector.load %arg11[%c0_27, %c0_28] : memref<8x1xf32, #tpu.memory_space<vmem>>, vector<8x1xf32>
    %32 = vector.broadcast %31 : vector<8x1xf32> to vector<8x128xf32>
    %33 = arith.addf %30, %32 : vector<8x128xf32>
    %c0_29 = arith.constant 0 : index
    %c0_30 = arith.constant 0 : index
    %34 = vector.load %arg12[%c0_29, %c0_30] : memref<8x128xf32, #tpu.memory_space<vmem>>, vector<8x128xf32>
    tpu.vector_store %arg12[%c0_29, %c0_30], %33 {strides = array<i32>} : memref<8x128xf32, #tpu.memory_space<vmem>>, vector<8x128xf32>,
    return
  }
  func.func @transform_0(%arg0: i32) -> (i32, i32) {
    %c0_i32 = arith.constant 0 : i32
    %c0_i32_0 = arith.constant 0 : i32
    return %c0_i32, %arg0 : i32, i32
  }
  func.func @transform_1(%arg0: i32) -> (i32, i32) {
    %c0_i32 = arith.constant 0 : i32
    %c0_i32_0 = arith.constant 0 : i32
    %c0_i32_1 = arith.constant 0 : i32
    return %c0_i32, %c0_i32_0 : i32, i32
  }
  func.func @transform_2(%arg0: i32) -> (i32, i32) {
    %c0_i32 = arith.constant 0 : i32
    %c0_i32_0 = arith.constant 0 : i32
    %c0_i32_1 = arith.constant 0 : i32
    return %c0_i32, %c0_i32_0 : i32, i32
  }
  func.func @transform_3(%arg0: i32) -> (i32, i32) {
    %c0_i32 = arith.constant 0 : i32
    %c0_i32_0 = arith.constant 0 : i32
    %c0_i32_1 = arith.constant 0 : i32
    return %c0_i32, %c0_i32_0 : i32, i32
  }
  func.func @transform_4(%arg0: i32) -> (i32, i32) {
    %c0_i32 = arith.constant 0 : i32
    %c0_i32_0 = arith.constant 0 : i32
    %c0_i32_1 = arith.constant 0 : i32
    return %c0_i32, %c0_i32_0 : i32, i32
  }
  func.func @transform_5(%arg0: i32) -> (i32, i32) {
    %c0_i32 = arith.constant 0 : i32
    %c0_i32_0 = arith.constant 0 : i32
    %c0_i32_1 = arith.constant 0 : i32
    return %c0_i32, %c0_i32_0 : i32, i32
  }
  func.func @transform_6(%arg0: i32) -> (i32, i32) {
    %c0_i32 = arith.constant 0 : i32
    %c0_i32_0 = arith.constant 0 : i32
    %c0_i32_1 = arith.constant 0 : i32
    return %c0_i32, %c0_i32_0 : i32, i32
  }
  func.func @transform_7(%arg0: i32) -> (i32, i32) {
    %c0_i32 = arith.constant 0 : i32
    %c0_i32_0 = arith.constant 0 : i32
    %c0_i32_1 = arith.constant 0 : i32
    return %c0_i32, %c0_i32_0 : i32, i32
  }
  func.func @transform_8(%arg0: i32) -> (i32, i32) {
    %c0_i32 = arith.constant 0 : i32
    %c0_i32_0 = arith.constant 0 : i32
    %c0_i32_1 = arith.constant 0 : i32
    return %c0_i32, %c0_i32_0 : i32, i32
  }
  func.func @transform_9(%arg0: i32) -> (i32, i32) {
    %c0_i32 = arith.constant 0 : i32
    %c0_i32_0 = arith.constant 0 : i32
    %c0_i32_1 = arith.constant 0 : i32
    return %c0_i32, %c0_i32_0 : i32, i32
  }
  func.func @transform_10(%arg0: i32) -> (i32, i32) {
    %c0_i32 = arith.constant 0 : i32
    %c0_i32_0 = arith.constant 0 : i32
    %c0_i32_1 = arith.constant 0 : i32
    return %c0_i32, %c0_i32_0 : i32, i32
  }
  func.func @transform_11(%arg0: i32) -> (i32, i32) {
    %c0_i32 = arith.constant 0 : i32
    %c0_i32_0 = arith.constant 0 : i32
    return %c0_i32, %arg0 : i32, i32
  }
}

</mosaic_0001>

<llo_original>
// kernel: tpu_custom_call.1
$region0: #{tpu_custom_call.1}
  #allocation0 [shape = 'u32[]', space=smem, size = 0x4, offset = 0x4, fixed_abs, tag = 'smem constant byte address 0x4 - core index']
  #allocation1 [shape = 'u32[72,128]{1,0:T(1,128)}', space=vmem, size = 0x9000, scoped, tag = 'internal scratch']
  %s0 = inlined_call_operand.vmem [shape: f32[100,128], index: 0, kind: input, shape index: {}]
  %s1 = inlined_call_operand.vmem [shape: f32[128,100], index: 1, kind: input, shape index: {}]
  %s2 = inlined_call_operand.vmem [shape: f32[128,1], index: 2, kind: input, shape index: {}]
  %s3 = inlined_call_operand.vmem [shape: f32[64,128], index: 3, kind: input, shape index: {}]
  %s4 = inlined_call_operand.vmem [shape: f32[64,1], index: 4, kind: input, shape index: {}]
  %s5 = inlined_call_operand.vmem [shape: f32[32,64], index: 5, kind: input, shape index: {}]
  %s6 = inlined_call_operand.vmem [shape: f32[32,1], index: 6, kind: input, shape index: {}]
  %s7 = inlined_call_operand.vmem [shape: f32[64,32], index: 7, kind: input, shape index: {}]
  %s8 = inlined_call_operand.vmem [shape: f32[64,1], index: 8, kind: input, shape index: {}]
  %s9 = inlined_call_operand.vmem [shape: f32[8,64], index: 9, kind: input, shape index: {}]
  %s10 = inlined_call_operand.vmem [shape: f32[8,1], index: 10, kind: input, shape index: {}]
  %s11 = inlined_call_operand.hbm [shape: f32[8,128], index: 11, kind: output, shape index: {}]
  %s12 = sld [smem:[#allocation0]]
  $region54: #{tpu_custom_call.1} parent=0
    _
  %s14 = ssub.s32 1, %s12
  %s15 = scalar_select 0, %s14, %s12
  $region1: #{tpu_custom_call.1} parent=0
    #allocation2 [shape = 'u8[4096]{0}', space=vmem, size = 0x1000, scoped, tag = 'output window, operand 0, single buffered']
    #allocation3 [shape = 's32[1]{0}', space=sflag, size = 0x4, scoped, tag = 'scoped memory for tpu_custom_call.1']
    %16 = vsyncpa [#allocation3], 0
    // Predicated region
    $region2: #{tpu_custom_call.1} parent=1 // pred_check
      _
    $region3: #{tpu_custom_call.1} parent=1 // pred_check_branch
      %18 = sbr.rel (0) target = $region5
    $region4: #{tpu_custom_call.1} parent=1 // pred_region
      _
    $region5: #{tpu_custom_call.1} parent=1 // pred_fallthru
      _
    // Predicated region
    $region6: #{tpu_custom_call.1} parent=1 // pred_check
      _
    $region7: #{tpu_custom_call.1} parent=1 // pred_check_branch
      %20 = sbr.rel (0) target = $region9
    $region8: #{tpu_custom_call.1} parent=1 // pred_region
      _
    $region9: #{tpu_custom_call.1} parent=1 // pred_fallthru
      _
    // Predicated region
    $region10: #{tpu_custom_call.1} parent=1 // pred_check
      _
    $region11: #{tpu_custom_call.1} parent=1 // pred_check_branch
      %22 = sbr.rel (0) target = $region13
    $region12: #{tpu_custom_call.1} parent=1 // pred_region
      _
    $region13: #{tpu_custom_call.1} parent=1 // pred_fallthru
      _
    // Predicated region
    $region14: #{tpu_custom_call.1} parent=1 // pred_check
      _
    $region15: #{tpu_custom_call.1} parent=1 // pred_check_branch
      %24 = sbr.rel (0) target = $region17
    $region16: #{tpu_custom_call.1} parent=1 // pred_region
      _
    $region17: #{tpu_custom_call.1} parent=1 // pred_fallthru
      _
    // Predicated region
    $region18: #{tpu_custom_call.1} parent=1 // pred_check
      _
    $region19: #{tpu_custom_call.1} parent=1 // pred_check_branch
      %26 = sbr.rel (0) target = $region21
    $region20: #{tpu_custom_call.1} parent=1 // pred_region
      _
    $region21: #{tpu_custom_call.1} parent=1 // pred_fallthru
      _
    // Predicated region
    $region22: #{tpu_custom_call.1} parent=1 // pred_check
      _
    $region23: #{tpu_custom_call.1} parent=1 // pred_check_branch
      %28 = sbr.rel (0) target = $region25
    $region24: #{tpu_custom_call.1} parent=1 // pred_region
      _
    $region25: #{tpu_custom_call.1} parent=1 // pred_fallthru
      _
    // Predicated region
    $region26: #{tpu_custom_call.1} parent=1 // pred_check
      _
    $region27: #{tpu_custom_call.1} parent=1 // pred_check_branch
      %30 = sbr.rel (0) target = $region29
    $region28: #{tpu_custom_call.1} parent=1 // pred_region
      _
    $region29: #{tpu_custom_call.1} parent=1 // pred_fallthru
      _
    // Predicated region
    $region30: #{tpu_custom_call.1} parent=1 // pred_check
      _
    $region31: #{tpu_custom_call.1} parent=1 // pred_check_branch
      %32 = sbr.rel (0) target = $region33
    $region32: #{tpu_custom_call.1} parent=1 // pred_region
      _
    $region33: #{tpu_custom_call.1} parent=1 // pred_fallthru
      _
    // Predicated region
    $region34: #{tpu_custom_call.1} parent=1 // pred_check
      _
    $region35: #{tpu_custom_call.1} parent=1 // pred_check_branch
      %34 = sbr.rel (0) target = $region37
    $region36: #{tpu_custom_call.1} parent=1 // pred_region
      _
    $region37: #{tpu_custom_call.1} parent=1 // pred_fallthru
      _
    // Predicated region
    $region38: #{tpu_custom_call.1} parent=1 // pred_check
      _
    $region39: #{tpu_custom_call.1} parent=1 // pred_check_branch
      %36 = sbr.rel (0) target = $region41
    $region40: #{tpu_custom_call.1} parent=1 // pred_region
      _
    $region41: #{tpu_custom_call.1} parent=1 // pred_fallthru
      _
    // Predicated region
    $region42: #{tpu_custom_call.1} parent=1 // pred_check
      _
    $region43: #{tpu_custom_call.1} parent=1 // pred_check_branch
      %38 = sbr.rel (0) target = $region45
    $region44: #{tpu_custom_call.1} parent=1 // pred_region
      _
    $region45: #{tpu_custom_call.1} parent=1 // pred_fallthru
      _
    %v39 = vld [vmem:[%s0] sm:$0xff]
    %v40 = vld [vmem:[%s0 + $0x8] sm:$0xff]
    %v41 = vld [vmem:[%s0 + $0x10] sm:$0xff]
    %v42 = vld [vmem:[%s0 + $0x18] sm:$0xff]
    %v43 = vld [vmem:[%s0 + $0x20] sm:$0xff]
    %v44 = vld [vmem:[%s0 + $0x28] sm:$0xff]
    %v45 = vld [vmem:[%s0 + $0x30] sm:$0xff]
    %v46 = vld [vmem:[%s0 + $0x38] sm:$0xff]
    %v47 = vld [vmem:[%s0 + $0x40] sm:$0xff]
    %v48 = vld [vmem:[%s0 + $0x48] sm:$0xff]
    %v49 = vld [vmem:[%s0 + $0x50] sm:$0xff]
    %v50 = vld [vmem:[%s0 + $0x58] sm:$0xff]
    %v51 = vld [vmem:[%s0 + $0x60] sm:$0xf]
    %v52 = vld [vmem:[%s1] sm:$0xff]
    %v53 = vld [vmem:[%s1 + $0x8] sm:$0xff]
    %v54 = vld [vmem:[%s1 + $0x10] sm:$0xff]
    %v55 = vld [vmem:[%s1 + $0x18] sm:$0xff]
    %v56 = vld [vmem:[%s1 + $0x20] sm:$0xff]
    %v57 = vld [vmem:[%s1 + $0x28] sm:$0xff]
    %v58 = vld [vmem:[%s1 + $0x30] sm:$0xff]
    %v59 = vld [vmem:[%s1 + $0x38] sm:$0xff]
    %v60 = vld [vmem:[%s1 + $0x40] sm:$0xff]
    %v61 = vld [vmem:[%s1 + $0x48] sm:$0xff]
    %v62 = vld [vmem:[%s1 + $0x50] sm:$0xff]
    %v63 = vld [vmem:[%s1 + $0x58] sm:$0xff]
    %v64 = vld [vmem:[%s1 + $0x60] sm:$0xff]
    %v65 = vld [vmem:[%s1 + $0x68] sm:$0xff]
    %v66 = vld [vmem:[%s1 + $0x70] sm:$0xff]
    %v67 = vld [vmem:[%s1 + $0x78] sm:$0xff]
    %v68 = vld [vmem:[%s2] sm:$0xff]
    %v69 = vld [vmem:[%s2 + $0x8] sm:$0xff]
    %v70 = vld [vmem:[%s2 + $0x10] sm:$0xff]
    %v71 = vld [vmem:[%s2 + $0x18] sm:$0xff]
    %v72 = vld [vmem:[%s2 + $0x20] sm:$0xff]
    %v73 = vld [vmem:[%s2 + $0x28] sm:$0xff]
    %v74 = vld [vmem:[%s2 + $0x30] sm:$0xff]
    %v75 = vld [vmem:[%s2 + $0x38] sm:$0xff]
    %v76 = vld [vmem:[%s2 + $0x40] sm:$0xff]
    %v77 = vld [vmem:[%s2 + $0x48] sm:$0xff]
    %v78 = vld [vmem:[%s2 + $0x50] sm:$0xff]
    %v79 = vld [vmem:[%s2 + $0x58] sm:$0xff]
    %v80 = vld [vmem:[%s2 + $0x60] sm:$0xff]
    %v81 = vld [vmem:[%s2 + $0x68] sm:$0xff]
    %v82 = vld [vmem:[%s2 + $0x70] sm:$0xff]
    %v83 = vld [vmem:[%s2 + $0x78] sm:$0xff]
    %85 = vset.pattern.permute.xlu0 0
    %86 = vperm.xlu0 %85, %v68
    %v87 = vpop.permute.xlu0 %86
    %90 = vset.pattern.permute.xlu0 0
    %91 = vperm.xlu0 %90, %v69
    %v92 = vpop.permute.xlu0 %91
    %95 = vset.pattern.permute.xlu0 0
    %96 = vperm.xlu0 %95, %v70
    %v97 = vpop.permute.xlu0 %96
    %100 = vset.pattern.permute.xlu0 0
    %101 = vperm.xlu0 %100, %v71
    %v102 = vpop.permute.xlu0 %101
    %105 = vset.pattern.permute.xlu0 0
    %106 = vperm.xlu0 %105, %v72
    %v107 = vpop.permute.xlu0 %106
    %110 = vset.pattern.permute.xlu0 0
    %111 = vperm.xlu0 %110, %v73
    %v112 = vpop.permute.xlu0 %111
    %115 = vset.pattern.permute.xlu0 0
    %116 = vperm.xlu0 %115, %v74
    %v117 = vpop.permute.xlu0 %116
    %120 = vset.pattern.permute.xlu0 0
    %121 = vperm.xlu0 %120, %v75
    %v122 = vpop.permute.xlu0 %121
    %125 = vset.pattern.permute.xlu0 0
    %126 = vperm.xlu0 %125, %v76
    %v127 = vpop.permute.xlu0 %126
    %130 = vset.pattern.permute.xlu0 0
    %131 = vperm.xlu0 %130, %v77
    %v132 = vpop.permute.xlu0 %131
    %135 = vset.pattern.permute.xlu0 0
    %136 = vperm.xlu0 %135, %v78
    %v137 = vpop.permute.xlu0 %136
    %140 = vset.pattern.permute.xlu0 0
    %141 = vperm.xlu0 %140, %v79
    %v142 = vpop.permute.xlu0 %141
    %145 = vset.pattern.permute.xlu0 0
    %146 = vperm.xlu0 %145, %v80
    %v147 = vpop.permute.xlu0 %146
    %150 = vset.pattern.permute.xlu0 0
    %151 = vperm.xlu0 %150, %v81
    %v152 = vpop.permute.xlu0 %151
    %155 = vset.pattern.permute.xlu0 0
    %156 = vperm.xlu0 %155, %v82
    %v157 = vpop.permute.xlu0 %156
    %160 = vset.pattern.permute.xlu0 0
    %161 = vperm.xlu0 %160, %v83
    %v162 = vpop.permute.xlu0 %161
    %vm164 = vcmask 818176
    %v166 = vsel %vm164, %v52, 0
    %v169 = vsel %vm164, %v53, 0
    %v172 = vsel %vm164, %v54, 0
    %v175 = vsel %vm164, %v55, 0
    %v178 = vsel %vm164, %v56, 0
    %v181 = vsel %vm164, %v57, 0
    %v184 = vsel %vm164, %v58, 0
    %v187 = vsel %vm164, %v59, 0
    %v190 = vsel %vm164, %v60, 0
    %v193 = vsel %vm164, %v61, 0
    %v196 = vsel %vm164, %v62, 0
    %v199 = vsel %vm164, %v63, 0
    %v202 = vsel %vm164, %v64, 0
    %v205 = vsel %vm164, %v65, 0
    %v208 = vsel %vm164, %v66, 0
    %v211 = vsel %vm164, %v67, 0
    %vm213 = vcmask 1043456
    %v215 = vsel %vm213, %v51, 0
    %217 = vmatpush.msra.mxu0 0.0
    %218 = vmatpush.msra.mxu0 0.0
    %219 = vmatpush.msra.mxu0 0.0
    %220 = vmatpush.msra.mxu0 %v215
    %221 = vmatpush.msra.mxu0 %v50
    %222 = vmatpush.msra.mxu0 %v49
    %223 = vmatpush.msra.mxu0 %v48
    %224 = vmatpush.msra.mxu0 %v47
    %225 = vmatpush.msra.mxu0 %v46
    %226 = vmatpush.msra.mxu0 %v45
    %227 = vmatpush.msra.mxu0 %v44
    %228 = vmatpush.msra.mxu0 %v43
    %229 = vmatpush.msra.mxu0 %v42
    %230 = vmatpush.msra.mxu0 %v41
    %231 = vmatpush.msra.mxu0 %v40
    %232 = vmatpush.msra.mxu0 %v39
    %233 = vmatmul.f32.gmra.mxu0 %v166
    %v234 = vpop.f32.mrf.mxu0
    %v235 = vadd.f32 %v87, %v234
    %236 = vmatmul.f32.gmra.mxu0 %v169
    %v237 = vpop.f32.mrf.mxu0
    %v238 = vadd.f32 %v92, %v237
    %239 = vmatmul.f32.gmra.mxu0 %v172
    %v240 = vpop.f32.mrf.mxu0
    %v241 = vadd.f32 %v97, %v240
    %242 = vmatmul.f32.gmra.mxu0 %v175
    %v243 = vpop.f32.mrf.mxu0
    %v244 = vadd.f32 %v102, %v243
    %245 = vmatmul.f32.gmra.mxu0 %v178
    %v246 = vpop.f32.mrf.mxu0
    %v247 = vadd.f32 %v107, %v246
    %248 = vmatmul.f32.gmra.mxu0 %v181
    %v249 = vpop.f32.mrf.mxu0
    %v250 = vadd.f32 %v112, %v249
    %251 = vmatmul.f32.gmra.mxu0 %v184
    %v252 = vpop.f32.mrf.mxu0
    %v253 = vadd.f32 %v117, %v252
    %254 = vmatmul.f32.gmra.mxu0 %v187
    %v255 = vpop.f32.mrf.mxu0
    %v256 = vadd.f32 %v122, %v255
    %257 = vmatmul.f32.gmra.mxu0 %v190
    %v258 = vpop.f32.mrf.mxu0
    %v259 = vadd.f32 %v127, %v258
    %260 = vmatmul.f32.gmra.mxu0 %v193
    %v261 = vpop.f32.mrf.mxu0
    %v262 = vadd.f32 %v132, %v261
    %263 = vmatmul.f32.gmra.mxu0 %v196
    %v264 = vpop.f32.mrf.mxu0
    %v265 = vadd.f32 %v137, %v264
    %266 = vmatmul.f32.gmra.mxu0 %v199
    %v267 = vpop.f32.mrf.mxu0
    %v268 = vadd.f32 %v142, %v267
    %269 = vmatmul.f32.gmra.mxu0 %v202
    %v270 = vpop.f32.mrf.mxu0
    %v271 = vadd.f32 %v147, %v270
    %272 = vmatmul.f32.gmra.mxu0 %v205
    %v273 = vpop.f32.mrf.mxu0
    %v274 = vadd.f32 %v152, %v273
    %275 = vmatmul.f32.gmra.mxu0 %v208
    %v276 = vpop.f32.mrf.mxu0
    %v277 = vadd.f32 %v157, %v276
    %278 = vmatmul.f32.gmra.mxu0 %v211
    %v279 = vpop.f32.mrf.mxu0
    %v280 = vadd.f32 %v162, %v279
    %281 = vdwg.mxu0
    %v282 = vmax.f32 %v235, 0.0
    %v283 = vmax.f32 %v238, 0.0
    %v284 = vmax.f32 %v241, 0.0
    %v285 = vmax.f32 %v244, 0.0
    %v286 = vmax.f32 %v247, 0.0
    %v287 = vmax.f32 %v250, 0.0
    %v288 = vmax.f32 %v253, 0.0
    %v289 = vmax.f32 %v256, 0.0
    %v290 = vmax.f32 %v259, 0.0
    %v291 = vmax.f32 %v262, 0.0
    %v292 = vmax.f32 %v265, 0.0
    %v293 = vmax.f32 %v268, 0.0
    %v294 = vmax.f32 %v271, 0.0
    %v295 = vmax.f32 %v274, 0.0
    %v296 = vmax.f32 %v277, 0.0
    %v297 = vmax.f32 %v280, 0.0
    %v298 = vld [vmem:[%s3] sm:$0xff]
    %v299 = vld [vmem:[%s3 + $0x8] sm:$0xff]
    %v300 = vld [vmem:[%s3 + $0x10] sm:$0xff]
    %v301 = vld [vmem:[%s3 + $0x18] sm:$0xff]
    %v302 = vld [vmem:[%s3 + $0x20] sm:$0xff]
    %v303 = vld [vmem:[%s3 + $0x28] sm:$0xff]
    %v304 = vld [vmem:[%s3 + $0x30] sm:$0xff]
    %v305 = vld [vmem:[%s3 + $0x38] sm:$0xff]
    %v306 = vld [vmem:[%s4] sm:$0xff]
    %v307 = vld [vmem:[%s4 + $0x8] sm:$0xff]
    %v308 = vld [vmem:[%s4 + $0x10] sm:$0xff]
    %v309 = vld [vmem:[%s4 + $0x18] sm:$0xff]
    %v310 = vld [vmem:[%s4 + $0x20] sm:$0xff]
    %v311 = vld [vmem:[%s4 + $0x28] sm:$0xff]
    %v312 = vld [vmem:[%s4 + $0x30] sm:$0xff]
    %v313 = vld [vmem:[%s4 + $0x38] sm:$0xff]
    %315 = vset.pattern.permute.xlu0 0
    %316 = vperm.xlu0 %315, %v306
    %v317 = vpop.permute.xlu0 %316
    %320 = vset.pattern.permute.xlu0 0
    %321 = vperm.xlu0 %320, %v307
    %v322 = vpop.permute.xlu0 %321
    %325 = vset.pattern.permute.xlu0 0
    %326 = vperm.xlu0 %325, %v308
    %v327 = vpop.permute.xlu0 %326
    %330 = vset.pattern.permute.xlu0 0
    %331 = vperm.xlu0 %330, %v309
    %v332 = vpop.permute.xlu0 %331
    %335 = vset.pattern.permute.xlu0 0
    %336 = vperm.xlu0 %335, %v310
    %v337 = vpop.permute.xlu0 %336
    %340 = vset.pattern.permute.xlu0 0
    %341 = vperm.xlu0 %340, %v311
    %v342 = vpop.permute.xlu0 %341
    %345 = vset.pattern.permute.xlu0 0
    %346 = vperm.xlu0 %345, %v312
    %v347 = vpop.permute.xlu0 %346
    %350 = vset.pattern.permute.xlu0 0
    %351 = vperm.xlu0 %350, %v313
    %v352 = vpop.permute.xlu0 %351
    %354 = vmatpush.msra.mxu0 %v297
    %355 = vmatpush.msra.mxu0 %v296
    %356 = vmatpush.msra.mxu0 %v295
    %357 = vmatpush.msra.mxu0 %v294
    %358 = vmatpush.msra.mxu0 %v293
    %359 = vmatpush.msra.mxu0 %v292
    %360 = vmatpush.msra.mxu0 %v291
    %361 = vmatpush.msra.mxu0 %v290
    %362 = vmatpush.msra.mxu0 %v289
    %363 = vmatpush.msra.mxu0 %v288
    %364 = vmatpush.msra.mxu0 %v287
    %365 = vmatpush.msra.mxu0 %v286
    %366 = vmatpush.msra.mxu0 %v285
    %367 = vmatpush.msra.mxu0 %v284
    %368 = vmatpush.msra.mxu0 %v283
    %369 = vmatpush.msra.mxu0 %v282
    %370 = vmatmul.f32.gmra.mxu0 %v298
    %v371 = vpop.f32.mrf.mxu0
    %v372 = vadd.f32 %v317, %v371
    %373 = vmatmul.f32.gmra.mxu0 %v299
    %v374 = vpop.f32.mrf.mxu0
    %v375 = vadd.f32 %v322, %v374
    %376 = vmatmul.f32.gmra.mxu0 %v300
    %v377 = vpop.f32.mrf.mxu0
    %v378 = vadd.f32 %v327, %v377
    %379 = vmatmul.f32.gmra.mxu0 %v301
    %v380 = vpop.f32.mrf.mxu0
    %v381 = vadd.f32 %v332, %v380
    %382 = vmatmul.f32.gmra.mxu0 %v302
    %v383 = vpop.f32.mrf.mxu0
    %v384 = vadd.f32 %v337, %v383
    %385 = vmatmul.f32.gmra.mxu0 %v303
    %v386 = vpop.f32.mrf.mxu0
    %v387 = vadd.f32 %v342, %v386
    %388 = vmatmul.f32.gmra.mxu0 %v304
    %v389 = vpop.f32.mrf.mxu0
    %v390 = vadd.f32 %v347, %v389
    %391 = vmatmul.f32.gmra.mxu0 %v305
    %v392 = vpop.f32.mrf.mxu0
    %v393 = vadd.f32 %v352, %v392
    %394 = vdwg.mxu0
    %v395 = vmax.f32 %v372, 0.0
    %v396 = vmax.f32 %v375, 0.0
    %v397 = vmax.f32 %v378, 0.0
    %v398 = vmax.f32 %v381, 0.0
    %v399 = vmax.f32 %v384, 0.0
    %v400 = vmax.f32 %v387, 0.0
    %v401 = vmax.f32 %v390, 0.0
    %v402 = vmax.f32 %v393, 0.0
    %v403 = vld [vmem:[%s5] sm:$0xff]
    %v404 = vld [vmem:[%s5 + $0x8] sm:$0xff]
    %v405 = vld [vmem:[%s5 + $0x10] sm:$0xff]
    %v406 = vld [vmem:[%s5 + $0x18] sm:$0xff]
    %v407 = vld [vmem:[%s6] sm:$0xff]
    %v408 = vld [vmem:[%s6 + $0x8] sm:$0xff]
    %v409 = vld [vmem:[%s6 + $0x10] sm:$0xff]
    %v410 = vld [vmem:[%s6 + $0x18] sm:$0xff]
    %412 = vset.pattern.permute.xlu0 0
    %413 = vperm.xlu0 %412, %v407
    %v414 = vpop.permute.xlu0 %413
    %417 = vset.pattern.permute.xlu0 0
    %418 = vperm.xlu0 %417, %v408
    %v419 = vpop.permute.xlu0 %418
    %422 = vset.pattern.permute.xlu0 0
    %423 = vperm.xlu0 %422, %v409
    %v424 = vpop.permute.xlu0 %423
    %427 = vset.pattern.permute.xlu0 0
    %428 = vperm.xlu0 %427, %v410
    %v429 = vpop.permute.xlu0 %428
    %vm431 = vcmask 523264
    %v433 = vsel %vm431, %v403, 0
    %v436 = vsel %vm431, %v404, 0
    %v439 = vsel %vm431, %v405, 0
    %v442 = vsel %vm431, %v406, 0
    %444 = vmatpush.msra.mxu0 0.0
    %445 = vmatpush.msra.mxu0 0.0
    %446 = vmatpush.msra.mxu0 0.0
    %447 = vmatpush.msra.mxu0 0.0
    %448 = vmatpush.msra.mxu0 0.0
    %449 = vmatpush.msra.mxu0 0.0
    %450 = vmatpush.msra.mxu0 0.0
    %451 = vmatpush.msra.mxu0 0.0
    %452 = vmatpush.msra.mxu0 %v402
    %453 = vmatpush.msra.mxu0 %v401
    %454 = vmatpush.msra.mxu0 %v400
    %455 = vmatpush.msra.mxu0 %v399
    %456 = vmatpush.msra.mxu0 %v398
    %457 = vmatpush.msra.mxu0 %v397
    %458 = vmatpush.msra.mxu0 %v396
    %459 = vmatpush.msra.mxu0 %v395
    %460 = vmatmul.f32.gmra.mxu0 %v433
    %v461 = vpop.f32.mrf.mxu0
    %v462 = vadd.f32 %v414, %v461
    %463 = vmatmul.f32.gmra.mxu0 %v436
    %v464 = vpop.f32.mrf.mxu0
    %v465 = vadd.f32 %v419, %v464
    %466 = vmatmul.f32.gmra.mxu0 %v439
    %v467 = vpop.f32.mrf.mxu0
    %v468 = vadd.f32 %v424, %v467
    %469 = vmatmul.f32.gmra.mxu0 %v442
    %v470 = vpop.f32.mrf.mxu0
    %v471 = vadd.f32 %v429, %v470
    %472 = vdwg.mxu0
    %v473 = vmax.f32 %v462, 0.0
    %v474 = vmax.f32 %v465, 0.0
    %v475 = vmax.f32 %v468, 0.0
    %v476 = vmax.f32 %v471, 0.0
    %v477 = vld [vmem:[%s7] sm:$0xff]
    %v478 = vld [vmem:[%s7 + $0x8] sm:$0xff]
    %v479 = vld [vmem:[%s7 + $0x10] sm:$0xff]
    %v480 = vld [vmem:[%s7 + $0x18] sm:$0xff]
    %v481 = vld [vmem:[%s7 + $0x20] sm:$0xff]
    %v482 = vld [vmem:[%s7 + $0x28] sm:$0xff]
    %v483 = vld [vmem:[%s7 + $0x30] sm:$0xff]
    %v484 = vld [vmem:[%s7 + $0x38] sm:$0xff]
    %v485 = vld [vmem:[%s8] sm:$0xff]
    %v486 = vld [vmem:[%s8 + $0x8] sm:$0xff]
    %v487 = vld [vmem:[%s8 + $0x10] sm:$0xff]
    %v488 = vld [vmem:[%s8 + $0x18] sm:$0xff]
    %v489 = vld [vmem:[%s8 + $0x20] sm:$0xff]
    %v490 = vld [vmem:[%s8 + $0x28] sm:$0xff]
    %v491 = vld [vmem:[%s8 + $0x30] sm:$0xff]
    %v492 = vld [vmem:[%s8 + $0x38] sm:$0xff]
    %494 = vset.pattern.permute.xlu0 0
    %495 = vperm.xlu0 %494, %v485
    %v496 = vpop.permute.xlu0 %495
    %499 = vset.pattern.permute.xlu0 0
    %500 = vperm.xlu0 %499, %v486
    %v501 = vpop.permute.xlu0 %500
    %504 = vset.pattern.permute.xlu0 0
    %505 = vperm.xlu0 %504, %v487
    %v506 = vpop.permute.xlu0 %505
    %509 = vset.pattern.permute.xlu0 0
    %510 = vperm.xlu0 %509, %v488
    %v511 = vpop.permute.xlu0 %510
    %514 = vset.pattern.permute.xlu0 0
    %515 = vperm.xlu0 %514, %v489
    %v516 = vpop.permute.xlu0 %515
    %519 = vset.pattern.permute.xlu0 0
    %520 = vperm.xlu0 %519, %v490
    %v521 = vpop.permute.xlu0 %520
    %524 = vset.pattern.permute.xlu0 0
    %525 = vperm.xlu0 %524, %v491
    %v526 = vpop.permute.xlu0 %525
    %529 = vset.pattern.permute.xlu0 0
    %530 = vperm.xlu0 %529, %v492
    %v531 = vpop.permute.xlu0 %530
    %vm533 = vcmask 261120
    %v535 = vsel %vm533, %v477, 0
    %v538 = vsel %vm533, %v478, 0
    %v541 = vsel %vm533, %v479, 0
    %v544 = vsel %vm533, %v480, 0
    %v547 = vsel %vm533, %v481, 0
    %v550 = vsel %vm533, %v482, 0
    %v553 = vsel %vm533, %v483, 0
    %v556 = vsel %vm533, %v484, 0
    %558 = vmatpush.msra.mxu0 0.0
    %559 = vmatpush.msra.mxu0 0.0
    %560 = vmatpush.msra.mxu0 0.0
    %561 = vmatpush.msra.mxu0 0.0
    %562 = vmatpush.msra.mxu0 0.0
    %563 = vmatpush.msra.mxu0 0.0
    %564 = vmatpush.msra.mxu0 0.0
    %565 = vmatpush.msra.mxu0 0.0
    %566 = vmatpush.msra.mxu0 0.0
    %567 = vmatpush.msra.mxu0 0.0
    %568 = vmatpush.msra.mxu0 0.0
    %569 = vmatpush.msra.mxu0 0.0
    %570 = vmatpush.msra.mxu0 %v476
    %571 = vmatpush.msra.mxu0 %v475
    %572 = vmatpush.msra.mxu0 %v474
    %573 = vmatpush.msra.mxu0 %v473
    %574 = vmatmul.f32.gmra.mxu0 %v535
    %v575 = vpop.f32.mrf.mxu0
    %v576 = vadd.f32 %v496, %v575
    %577 = vmatmul.f32.gmra.mxu0 %v538
    %v578 = vpop.f32.mrf.mxu0
    %v579 = vadd.f32 %v501, %v578
    %580 = vmatmul.f32.gmra.mxu0 %v541
    %v581 = vpop.f32.mrf.mxu0
    %v582 = vadd.f32 %v506, %v581
    %583 = vmatmul.f32.gmra.mxu0 %v544
    %v584 = vpop.f32.mrf.mxu0
    %v585 = vadd.f32 %v511, %v584
    %586 = vmatmul.f32.gmra.mxu0 %v547
    %v587 = vpop.f32.mrf.mxu0
    %v588 = vadd.f32 %v516, %v587
    %589 = vmatmul.f32.gmra.mxu0 %v550
    %v590 = vpop.f32.mrf.mxu0
    %v591 = vadd.f32 %v521, %v590
    %592 = vmatmul.f32.gmra.mxu0 %v553
    %v593 = vpop.f32.mrf.mxu0
    %v594 = vadd.f32 %v526, %v593
    %595 = vmatmul.f32.gmra.mxu0 %v556
    %v596 = vpop.f32.mrf.mxu0
    %v597 = vadd.f32 %v531, %v596
    %598 = vdwg.mxu0
    %v599 = vmax.f32 %v576, 0.0
    %v600 = vmax.f32 %v579, 0.0
    %v601 = vmax.f32 %v582, 0.0
    %v602 = vmax.f32 %v585, 0.0
    %v603 = vmax.f32 %v588, 0.0
    %v604 = vmax.f32 %v591, 0.0
    %v605 = vmax.f32 %v594, 0.0
    %v606 = vmax.f32 %v597, 0.0
    %v607 = vld [vmem:[%s9] sm:$0xff]
    %v608 = vld [vmem:[%s10] sm:$0xff]
    %610 = vset.pattern.permute.xlu0 0
    %611 = vperm.xlu0 %610, %v608
    %v612 = vpop.permute.xlu0 %611
    %v615 = vsel %vm431, %v607, 0
    %617 = vmatpush.msra.mxu0 0.0
    %618 = vmatpush.msra.mxu0 0.0
    %619 = vmatpush.msra.mxu0 0.0
    %620 = vmatpush.msra.mxu0 0.0
    %621 = vmatpush.msra.mxu0 0.0
    %622 = vmatpush.msra.mxu0 0.0
    %623 = vmatpush.msra.mxu0 0.0
    %624 = vmatpush.msra.mxu0 0.0
    %625 = vmatpush.msra.mxu0 %v606
    %626 = vmatpush.msra.mxu0 %v605
    %627 = vmatpush.msra.mxu0 %v604
    %628 = vmatpush.msra.mxu0 %v603
    %629 = vmatpush.msra.mxu0 %v602
    %630 = vmatpush.msra.mxu0 %v601
    %631 = vmatpush.msra.mxu0 %v600
    %632 = vmatpush.msra.mxu0 %v599
    %633 = vmatmul.f32.gmra.mxu0 %v615
    %v634 = vpop.f32.mrf.mxu0
    %v635 = vadd.f32 %v612, %v634
    %636 = vdwg.mxu0
    %637 = vst [vmem:[#allocation2] sm:$0xff] %v635
    // Predicated region
    $region46: #{tpu_custom_call.1} parent=1 // pred_check
      _
    $region47: #{tpu_custom_call.1} parent=1 // pred_check_branch
      %639 = sbr.rel (0) target = $region49
    $region48: #{tpu_custom_call.1} parent=1 // pred_region
      %641 = vsyncadd [#allocation3], 0
      %s643 = sshll.u32 [#allocation2], 4
      %s644 = int_to_ptr.vmem [resolvable:$true] %s643
      %s645 = sshll.u32 %s11, 4
      %s646 = int_to_ptr.hbm [resolvable:$true] %s645
      %648 = dma.vmem_to_hbm [thread:$0]  %s644, 128, %s646, [#allocation3]
    $region49: #{tpu_custom_call.1} parent=1 // pred_fallthru
      _
    // Predicated region
    $region50: #{tpu_custom_call.1} parent=1 // pred_check
      _
    $region51: #{tpu_custom_call.1} parent=1 // pred_check_branch
      %650 = sbr.rel (0) target = $region53
    $region52: #{tpu_custom_call.1} parent=1 // pred_region
      %652 = dma.done [#allocation3], 128
    $region53: #{tpu_custom_call.1} parent=1 // pred_fallthru
      _
    %653 = vsyncpa [#allocation3], 1

</llo_original>
